<compile_context>
chip_gen: v5e
topology: v5e:2x2
jax: 0.10.0
libtpu: 0.0.40
codegen_flags: <defaults>
</compile_context>

<pallas_src>
import jax
import jax.numpy as jnp
from jax import lax
from jax.experimental import pallas as pl
from jax.experimental.pallas import tpu as pltpu

IN_SIZE = 3
KPAD = 8                # contraction dim of layer 1, padded for the MXU
HIDDEN = 128
HIDDEN2 = HIDDEN // 2   # 64
EPS = 1e-5              # torch.nn.LayerNorm default eps
LANE = 128
MAX_BB = 4096           # keeps intermediates well inside scoped VMEM everywhere


def _round_up(n, m):
    return ((n + m - 1) // m) * m


def _num_tensorcores():
    """2 on v7x (2 TC/chip), 1 on v5e/v6e.  Best effort; defaults to 1."""
    try:
        kind = jax.devices()[0].device_kind.lower()
        if "v7" in kind:
            return 2
    except Exception:
        pass
    return 1


def _mlp_kernel(x_ref, w1_ref, w2_ref, b2_ref, w2s_ref, w3_ref, b3_ref, o_ref):
    # x_ref : (8, bb)  rows 0..2 = features, row 3 = ones (bias lane), 4..7 = 0
    # w1_ref: (128, 8) cols 0..2 = w1^T,     col 3 = b1,                4..7 = 0
    # w2_ref: (64, 128) gamma-folded w2^T;  b2_ref: (64, 1) beta-folded bias
    # w2s_ref: (64, 1) row-sums of w2_ref (for the LayerNorm-mean correction)
    # w3_ref: (64, 1);  b3_ref: (1, 1)

    # --- Linear(3,128) + bias + ReLU as one MXU matmul (K padded 3 -> 8) ---
    h1 = jnp.dot(w1_ref[...], x_ref[...],
                 preferred_element_type=jnp.float32)          # (128, bb)
    h1 = jnp.maximum(h1, 0.0)

    # --- LayerNorm(128) statistics over the feature (sublane) axis ---------
    inv_n = jnp.float32(1.0 / HIDDEN)
    mean = jnp.sum(h1, axis=0, keepdims=True) * inv_n          # (1, bb)
    ex2 = jnp.sum(h1 * h1, axis=0, keepdims=True) * inv_n      # (1, bb)
    var = ex2 - mean * mean
    inv = lax.rsqrt(var + EPS)                                 # (1, bb)  (EUP)
    m_inv = mean * inv                                         # (1, bb)

    # --- Linear(128,64) with LayerNorm folded into the epilogue ------------
    #   w2' @ ((h1 - mean) * inv) + b2'
    # = (w2' @ h1) * inv - rowsum(w2') * (mean * inv) + b2'
    # -> h1n is never materialized; only ~3 VALU ops per (64, bb) vreg.
    mm = jnp.dot(w2_ref[...], h1,
                 preferred_element_type=jnp.float32)           # (64, bb)
    h2 = jnp.maximum(mm * inv - w2s_ref[...] * m_inv + b2_ref[...], 0.0)

    # --- Linear(64,1) + Sigmoid as VPU multiply + sublane reduce ------------
    h3 = jnp.sum(h2 * w3_ref[...], axis=0, keepdims=True) + b3_ref[...]
    o_ref[...] = jax.nn.sigmoid(h3).astype(o_ref.dtype)        # (1, bb)


def threat_analysis_forward(x, params, *, block_b=2048):
    """x: (B, 3) float32. Returns (B, 1) float32 in [0, 1]."""
    B, F = x.shape
    assert F == IN_SIZE
    w1, b1, gamma, beta, w2, b2, w3, b3 = params

    # ---- parameter prep (exact layout plumbing + folds, done in XLA) -------
    w1 = jnp.asarray(w1, jnp.float32)
    b1 = jnp.asarray(b1, jnp.float32)
    w2 = jnp.asarray(w2, jnp.float32)
    b2 = jnp.asarray(b2, jnp.float32)
    w3 = jnp.asarray(w3, jnp.float32)
    b3 = jnp.asarray(b3, jnp.float32)
    gamma = jnp.asarray(gamma, jnp.float32)
    beta = jnp.asarray(beta, jnp.float32)

    # Layer 1: pad K 3 -> 8 and fold the bias into column 3.
    w1_pad = jnp.concatenate(
        [w1.T, b1.reshape(HIDDEN, 1), jnp.zeros((HIDDEN, KPAD - IN_SIZE - 1),
                                                jnp.float32)],
        axis=1)                                               # (128, 8)

    # Layer 2: fold gamma/beta (exact: LN is affine, no nonlinearity between).
    w2pT = w2.T * gamma[None, :]                              # (64, 128)
    b2pc = (beta @ w2 + b2).reshape(HIDDEN2, 1)               # (64, 1)
    w2_rowsum = jnp.sum(w2pT, axis=1, keepdims=True)          # (64, 1)

    w3c = w3.reshape(HIDDEN2, 1)                              # (64, 1)
    b3c = b3.reshape(1, 1)                                    # (1, 1)

    # ---- batch tile: multiple of 128, <= MAX_BB; shrink for >=2 grid steps
    # only on 2-TC parts (v7x).  Ragged batches are zero-padded & sliced off.
    b_pad128 = _round_up(B, LANE)
    bb = max(LANE, min(_round_up(block_b, LANE), MAX_BB, b_pad128))
    if _num_tensorcores() >= 2 and b_pad128 // bb < 2 and b_pad128 >= 2 * LANE:
        bb = _round_up(b_pad128 // 2, LANE)
    B_pad = _round_up(B, bb)
    grid = (B_pad // bb,)

    # ---- build the (8, B_pad) input slab: x^T, a ones row (bias), zeros ----
    xT = jnp.pad(jnp.asarray(x, jnp.float32).T, ((0, 0), (0, B_pad - B)))
    x_pad = jnp.concatenate(
        [xT,
         jnp.ones((1, B_pad), jnp.float32),
         jnp.zeros((KPAD - IN_SIZE - 1, B_pad), jnp.float32)],
        axis=0)                                               # (8, B_pad)

    rep = lambda i: (0, 0)

    out_row = pl.pallas_call(
        _mlp_kernel,
        out_shape=jax.ShapeDtypeStruct((1, B_pad), jnp.float32),
        grid_spec=pltpu.PrefetchScalarGridSpec(
            num_scalar_prefetch=0,
            grid=grid,
            in_specs=[
                pl.BlockSpec((KPAD, bb), lambda i: (0, i)),    # x tile (lane-dense)
                pl.BlockSpec((HIDDEN, KPAD), rep),             # w1 padded (+bias col)
                pl.BlockSpec((HIDDEN2, HIDDEN), rep),          # w2' (gamma folded)
                pl.BlockSpec((HIDDEN2, 1), rep),               # b2' (beta folded)
                pl.BlockSpec((HIDDEN2, 1), rep),               # rowsum(w2')
                pl.BlockSpec((HIDDEN2, 1), rep),               # w3
                pl.BlockSpec((1, 1), rep),                     # b3
            ],
            out_specs=pl.BlockSpec((1, bb), lambda i: (0, i)), # lane-dense output
        ),
        compiler_params=pltpu.CompilerParams(
            dimension_semantics=("parallel",)),
    )(x_pad, w1_pad, w2pT, b2pc, w2_rowsum, w3c, b3c)

    return out_row[0, :B].reshape(B, 1)


def init_params(key):
    """Deterministic synthetic parameters matching the torch module's shapes.

    Weights are stored as (in_features, out_features); callers importing torch
    weights must transpose.
    """
    k1, k2, k3, k4, k5, k6 = jax.random.split(key, 6)
    w1 = jax.random.normal(k1, (IN_SIZE, HIDDEN), jnp.float32) * 0.1
    b1 = jax.random.normal(k2, (HIDDEN,), jnp.float32) * 0.01
    gamma = jnp.ones((HIDDEN,), jnp.float32)      # nn.LayerNorm default init
    beta = jnp.zeros((HIDDEN,), jnp.float32)
    w2 = jax.random.normal(k3, (HIDDEN, HIDDEN2), jnp.float32) * 0.1
    b2 = jax.random.normal(k4, (HIDDEN2,), jnp.float32) * 0.01
    w3 = jax.random.normal(k5, (HIDDEN2, 1), jnp.float32) * 0.1
    b3 = jax.random.normal(k6, (1,), jnp.float32) * 0.01
    return (w1, b1, gamma, beta, w2, b2, w3, b3)


def reference_forward(x, params):
    """Pure-JAX reference of the torch forward pass for a sanity check."""
    w1, b1, gamma, beta, w2, b2, w3, b3 = params
    h = jnp.maximum(x @ w1 + b1, 0.0)
    mean = jnp.mean(h, axis=-1, keepdims=True)
    var = jnp.mean((h - mean) ** 2, axis=-1, keepdims=True)
    h = (h - mean) / jnp.sqrt(var + EPS) * gamma + beta
    h = jnp.maximum(h @ w2 + b2, 0.0)
    return jax.nn.sigmoid(h @ w3 + b3)


if __name__ == "__main__":
    key = jax.random.PRNGKey(0)
    kx, kp = jax.random.split(key)

    B = 200  # small, deliberately NOT a multiple of 128 -> exercises padding
    x = jax.random.normal(kx, (B, IN_SIZE), jnp.float32)
    params = init_params(kp)

    out = threat_analysis_forward(x, params)
    out = jax.block_until_ready(out)

    ref = reference_forward(x, params)
    assert out.shape == (B, 1)
    assert bool(jnp.all(jnp.isfinite(out)))
    assert jnp.allclose(out, ref, atol=1e-4, rtol=1e-4), "mismatch vs. JAX reference"

    print("KERNEL_OK")
</pallas_src>

<mosaic_0001>
module attributes {stable_mosaic.version = 11 : i64} {
  func.func @_mlp_kernel(%arg0: i32, %arg1: memref<8x256xf32, #tpu.memory_space<vmem>>, %arg2: memref<128x8xf32, #tpu.memory_space<vmem>>, %arg3: memref<64x128xf32, #tpu.memory_space<vmem>>, %arg4: memref<64x1xf32, #tpu.memory_space<vmem>>, %arg5: memref<64x1xf32, #tpu.memory_space<vmem>>, %arg6: memref<64x1xf32, #tpu.memory_space<vmem>>, %arg7: memref<1x1xf32, #tpu.memory_space<vmem>>, %arg8: memref<1x256xf32, #tpu.memory_space<vmem>>) attributes {dimension_semantics = [#tpu.dimension_semantics<parallel>], iteration_bounds = array<i64: 1>, scalar_prefetch = 0 : i64, scratch_operands = 0 : i64, tpu.core_type = #tpu.core_type<tc>, window_params = [{transform_indices = @transform_0, window_bounds = array<i64: 8, 256>}, {pipeline_mode = #tpu.pipeline_mode<synchronous>, transform_indices = @transform_1, window_bounds = array<i64: 128, 8>}, {pipeline_mode = #tpu.pipeline_mode<synchronous>, transform_indices = @transform_2, window_bounds = array<i64: 64, 128>}, {pipeline_mode = #tpu.pipeline_mode<synchronous>, transform_indices = @transform_3, window_bounds = array<i64: 64, 1>}, {pipeline_mode = #tpu.pipeline_mode<synchronous>, transform_indices = @transform_4, window_bounds = array<i64: 64, 1>}, {pipeline_mode = #tpu.pipeline_mode<synchronous>, transform_indices = @transform_5, window_bounds = array<i64: 64, 1>}, {pipeline_mode = #tpu.pipeline_mode<synchronous>, transform_indices = @transform_6, window_bounds = array<i64: 1, 1>}, {transform_indices = @transform_7, window_bounds = array<i64: 1, 256>}]} {
    %c0 = arith.constant 0 : index
    %c0_0 = arith.constant 0 : index
    %0 = vector.load %arg2[%c0, %c0_0] : memref<128x8xf32, #tpu.memory_space<vmem>>, vector<128x8xf32>
    %c0_1 = arith.constant 0 : index
    %c0_2 = arith.constant 0 : index
    %1 = vector.load %arg1[%c0_1, %c0_2] : memref<8x256xf32, #tpu.memory_space<vmem>>, vector<8x256xf32>
    %cst = arith.constant dense<0.000000e+00> : vector<128x256xf32>
    %2 = tpu.matmul %0, %1, %cst {dimension_numbers = #tpu.dot_dimension_numbers<[1], [0], [0], [1], [0, 0, 1, 1], [], []>} : vector<128x8xf32>, vector<8x256xf32>, vector<128x256xf32> -> vector<128x256xf32>
    %cst_3 = arith.constant 0.000000e+00 : f32
    %3 = vector.broadcast %cst_3 : f32 to vector<128x256xf32>
    %4 = arith.maximumf %2, %3 : vector<128x256xf32>
    %cst_4 = arith.constant dense<0.000000e+00> : vector<256xf32>
    %5 = vector.multi_reduction <add>, %4, %cst_4 [0] : vector<128x256xf32> to vector<256xf32>
    %6 = vector.shape_cast %5 : vector<256xf32> to vector<1x256xf32>
    %cst_5 = arith.constant 7.812500e-03 : f32
    %7 = vector.broadcast %cst_5 : f32 to vector<1x256xf32>
    %8 = arith.mulf %6, %7 : vector<1x256xf32>
    %9 = arith.mulf %4, %4 : vector<128x256xf32>
    %cst_6 = arith.constant dense<0.000000e+00> : vector<256xf32>
    %10 = vector.multi_reduction <add>, %9, %cst_6 [0] : vector<128x256xf32> to vector<256xf32>
    %11 = vector.shape_cast %10 : vector<256xf32> to vector<1x256xf32>
    %cst_7 = arith.constant 7.812500e-03 : f32
    %12 = vector.broadcast %cst_7 : f32 to vector<1x256xf32>
    %13 = arith.mulf %11, %12 : vector<1x256xf32>
    %14 = arith.mulf %8, %8 : vector<1x256xf32>
    %15 = arith.subf %13, %14 : vector<1x256xf32>
    %cst_8 = arith.constant 9.99999974E-6 : f32
    %16 = vector.broadcast %cst_8 : f32 to vector<1x256xf32>
    %17 = arith.addf %15, %16 : vector<1x256xf32>
    %18 = math.rsqrt %17 : vector<1x256xf32>
    %19 = arith.mulf %8, %18 : vector<1x256xf32>
    %c0_9 = arith.constant 0 : index
    %c0_10 = arith.constant 0 : index
    %20 = vector.load %arg3[%c0_9, %c0_10] : memref<64x128xf32, #tpu.memory_space<vmem>>, vector<64x128xf32>
    %cst_11 = arith.constant dense<0.000000e+00> : vector<64x256xf32>
    %21 = tpu.matmul %20, %4, %cst_11 {dimension_numbers = #tpu.dot_dimension_numbers<[1], [0], [0], [1], [0, 0, 1, 1], [], []>} : vector<64x128xf32>, vector<128x256xf32>, vector<64x256xf32> -> vector<64x256xf32>
    %22 = vector.broadcast %18 : vector<1x256xf32> to vector<64x256xf32>
    %23 = arith.mulf %21, %22 : vector<64x256xf32>
    %c0_12 = arith.constant 0 : index
    %c0_13 = arith.constant 0 : index
    %24 = vector.load %arg5[%c0_12, %c0_13] : memref<64x1xf32, #tpu.memory_space<vmem>>, vector<64x1xf32>
    %25 = vector.broadcast %24 : vector<64x1xf32> to vector<64x256xf32>
    %26 = vector.broadcast %19 : vector<1x256xf32> to vector<64x256xf32>
    %27 = arith.mulf %25, %26 : vector<64x256xf32>
    %28 = arith.subf %23, %27 : vector<64x256xf32>
    %c0_14 = arith.constant 0 : index
    %c0_15 = arith.constant 0 : index
    %29 = vector.load %arg4[%c0_14, %c0_15] : memref<64x1xf32, #tpu.memory_space<vmem>>, vector<64x1xf32>
    %30 = vector.broadcast %29 : vector<64x1xf32> to vector<64x256xf32>
    %31 = arith.addf %28, %30 : vector<64x256xf32>
    %cst_16 = arith.constant 0.000000e+00 : f32
    %32 = vector.broadcast %cst_16 : f32 to vector<64x256xf32>
    %33 = arith.maximumf %31, %32 : vector<64x256xf32>
    %c0_17 = arith.constant 0 : index
    %c0_18 = arith.constant 0 : index
    %34 = vector.load %arg6[%c0_17, %c0_18] : memref<64x1xf32, #tpu.memory_space<vmem>>, vector<64x1xf32>
    %35 = vector.broadcast %34 : vector<64x1xf32> to vector<64x256xf32>
    %36 = arith.mulf %33, %35 : vector<64x256xf32>
    %cst_19 = arith.constant dense<0.000000e+00> : vector<256xf32>
    %37 = vector.multi_reduction <add>, %36, %cst_19 [0] : vector<64x256xf32> to vector<256xf32>
    %38 = vector.shape_cast %37 : vector<256xf32> to vector<1x256xf32>
    %c0_20 = arith.constant 0 : index
    %c0_21 = arith.constant 0 : index
    %39 = vector.load %arg7[%c0_20, %c0_21] : memref<1x1xf32, #tpu.memory_space<vmem>>, vector<1x1xf32>
    %40 = vector.broadcast %39 : vector<1x1xf32> to vector<1x256xf32>
    %41 = arith.addf %38, %40 : vector<1x256xf32>
    %42 = arith.negf %41 : vector<1x256xf32>
    %43 = math.exp %42 : vector<1x256xf32>
    %cst_22 = arith.constant 1.000000e+00 : f32
    %44 = vector.broadcast %cst_22 : f32 to vector<1x256xf32>
    %45 = arith.addf %44, %43 : vector<1x256xf32>
    %46 = arith.divf %44, %45 : vector<1x256xf32>
    %c0_23 = arith.constant 0 : index
    %c0_24 = arith.constant 0 : index
    %47 = vector.load %arg8[%c0_23, %c0_24] : memref<1x256xf32, #tpu.memory_space<vmem>>, vector<1x256xf32>
    tpu.vector_store %arg8[%c0_23, %c0_24], %46 {strides = array<i32>} : memref<1x256xf32, #tpu.memory_space<vmem>>, vector<1x256xf32>,
    return
  }
  func.func @transform_0(%arg0: i32) -> (i32, i32) {
    %c0_i32 = arith.constant 0 : i32
    %c0_i32_0 = arith.constant 0 : i32
    return %c0_i32, %arg0 : i32, i32
  }
  func.func @transform_1(%arg0: i32) -> (i32, i32) {
    %c0_i32 = arith.constant 0 : i32
    %c0_i32_0 = arith.constant 0 : i32
    %c0_i32_1 = arith.constant 0 : i32
    return %c0_i32, %c0_i32_0 : i32, i32
  }
  func.func @transform_2(%arg0: i32) -> (i32, i32) {
    %c0_i32 = arith.constant 0 : i32
    %c0_i32_0 = arith.constant 0 : i32
    %c0_i32_1 = arith.constant 0 : i32
    return %c0_i32, %c0_i32_0 : i32, i32
  }
  func.func @transform_3(%arg0: i32) -> (i32, i32) {
    %c0_i32 = arith.constant 0 : i32
    %c0_i32_0 = arith.constant 0 : i32
    %c0_i32_1 = arith.constant 0 : i32
    return %c0_i32, %c0_i32_0 : i32, i32
  }
  func.func @transform_4(%arg0: i32) -> (i32, i32) {
    %c0_i32 = arith.constant 0 : i32
    %c0_i32_0 = arith.constant 0 : i32
    %c0_i32_1 = arith.constant 0 : i32
    return %c0_i32, %c0_i32_0 : i32, i32
  }
  func.func @transform_5(%arg0: i32) -> (i32, i32) {
    %c0_i32 = arith.constant 0 : i32
    %c0_i32_0 = arith.constant 0 : i32
    %c0_i32_1 = arith.constant 0 : i32
    return %c0_i32, %c0_i32_0 : i32, i32
  }
  func.func @transform_6(%arg0: i32) -> (i32, i32) {
    %c0_i32 = arith.constant 0 : i32
    %c0_i32_0 = arith.constant 0 : i32
    %c0_i32_1 = arith.constant 0 : i32
    return %c0_i32, %c0_i32_0 : i32, i32
  }
  func.func @transform_7(%arg0: i32) -> (i32, i32) {
    %c0_i32 = arith.constant 0 : i32
    %c0_i32_0 = arith.constant 0 : i32
    return %c0_i32, %arg0 : i32, i32
  }
}

</mosaic_0001>

<llo_original>
// kernel: tpu_custom_call.1
$region0: #{tpu_custom_call.1}
  #allocation0 [shape = 'u32[]', space=smem, size = 0x4, offset = 0x4, fixed_abs, tag = 'smem constant byte address 0x4 - core index']
  #allocation1 [shape = 'u32[72,128]{1,0:T(1,128)}', space=vmem, size = 0x9000, scoped, tag = 'internal scratch']
  #allocation2 [shape = 'f32[1,1]{1,0:T(1,128)S(1)}', space=vmem, size = 0x200, scoped, tag = 'scoped memory for tpu_custom_call.1']
  %s0 = inlined_call_operand.vmem [shape: f32[8,256], index: 0, kind: input, shape index: {}]
  %s1 = inlined_call_operand.vmem [shape: f32[128,8], index: 1, kind: input, shape index: {}]
  %s2 = inlined_call_operand.vmem [shape: f32[64,128], index: 2, kind: input, shape index: {}]
  %s3 = inlined_call_operand.vmem [shape: f32[64,1], index: 3, kind: input, shape index: {}]
  %s4 = inlined_call_operand.vmem [shape: f32[64,1], index: 4, kind: input, shape index: {}]
  %s5 = inlined_call_operand.vmem [shape: f32[64,1], index: 5, kind: input, shape index: {}]
  %s6 = inlined_call_operand.<no memory space> [shape: f32[1,1], index: 6, kind: input, shape index: {}]
  %s7 = inlined_call_operand.hbm [shape: f32[1,256], index: 7, kind: output, shape index: {}]
  %s8 = sld [smem:[#allocation0]]
  $region38: #{tpu_custom_call.1} parent=0
    _
  %s10 = ssub.s32 1, %s8
  %s11 = scalar_select 0, %s10, %s8
  %v12 = vstv %s6
  %13 = vst [vmem:[#allocation2] sm:$0x1] %v12
  $region1: #{tpu_custom_call.1} parent=0
    #allocation3 [shape = 'u8[1024]{0}', space=vmem, size = 0x400, scoped, tag = 'output window, operand 0, single buffered']
    #allocation4 [shape = 's32[1]{0}', space=sflag, size = 0x4, scoped, tag = 'scoped memory for tpu_custom_call.1']
    %14 = vsyncpa [#allocation4], 0
    // Predicated region
    $region2: #{tpu_custom_call.1} parent=1 // pred_check
      _
    $region3: #{tpu_custom_call.1} parent=1 // pred_check_branch
      %16 = sbr.rel (0) target = $region5
    $region4: #{tpu_custom_call.1} parent=1 // pred_region
      _
    $region5: #{tpu_custom_call.1} parent=1 // pred_fallthru
      _
    // Predicated region
    $region6: #{tpu_custom_call.1} parent=1 // pred_check
      _
    $region7: #{tpu_custom_call.1} parent=1 // pred_check_branch
      %18 = sbr.rel (0) target = $region9
    $region8: #{tpu_custom_call.1} parent=1 // pred_region
      _
    $region9: #{tpu_custom_call.1} parent=1 // pred_fallthru
      _
    // Predicated region
    $region10: #{tpu_custom_call.1} parent=1 // pred_check
      _
    $region11: #{tpu_custom_call.1} parent=1 // pred_check_branch
      %20 = sbr.rel (0) target = $region13
    $region12: #{tpu_custom_call.1} parent=1 // pred_region
      _
    $region13: #{tpu_custom_call.1} parent=1 // pred_fallthru
      _
    // Predicated region
    $region14: #{tpu_custom_call.1} parent=1 // pred_check
      _
    $region15: #{tpu_custom_call.1} parent=1 // pred_check_branch
      %22 = sbr.rel (0) target = $region17
    $region16: #{tpu_custom_call.1} parent=1 // pred_region
      _
    $region17: #{tpu_custom_call.1} parent=1 // pred_fallthru
      _
    // Predicated region
    $region18: #{tpu_custom_call.1} parent=1 // pred_check
      _
    $region19: #{tpu_custom_call.1} parent=1 // pred_check_branch
      %24 = sbr.rel (0) target = $region21
    $region20: #{tpu_custom_call.1} parent=1 // pred_region
      _
    $region21: #{tpu_custom_call.1} parent=1 // pred_fallthru
      _
    // Predicated region
    $region22: #{tpu_custom_call.1} parent=1 // pred_check
      _
    $region23: #{tpu_custom_call.1} parent=1 // pred_check_branch
      %26 = sbr.rel (0) target = $region25
    $region24: #{tpu_custom_call.1} parent=1 // pred_region
      _
    $region25: #{tpu_custom_call.1} parent=1 // pred_fallthru
      _
    // Predicated region
    $region26: #{tpu_custom_call.1} parent=1 // pred_check
      _
    $region27: #{tpu_custom_call.1} parent=1 // pred_check_branch
      %28 = sbr.rel (0) target = $region29
    $region28: #{tpu_custom_call.1} parent=1 // pred_region
      _
    $region29: #{tpu_custom_call.1} parent=1 // pred_fallthru
      _
    %v29 = vld [vmem:[%s1] sm:$0xff]
    %v30 = vld [vmem:[%s1 + $0x8] sm:$0xff]
    %v31 = vld [vmem:[%s1 + $0x10] sm:$0xff]
    %v32 = vld [vmem:[%s1 + $0x18] sm:$0xff]
    %v33 = vld [vmem:[%s1 + $0x20] sm:$0xff]
    %v34 = vld [vmem:[%s1 + $0x28] sm:$0xff]
    %v35 = vld [vmem:[%s1 + $0x30] sm:$0xff]
    %v36 = vld [vmem:[%s1 + $0x38] sm:$0xff]
    %v37 = vld [vmem:[%s1 + $0x40] sm:$0xff]
    %v38 = vld [vmem:[%s1 + $0x48] sm:$0xff]
    %v39 = vld [vmem:[%s1 + $0x50] sm:$0xff]
    %v40 = vld [vmem:[%s1 + $0x58] sm:$0xff]
    %v41 = vld [vmem:[%s1 + $0x60] sm:$0xff]
    %v42 = vld [vmem:[%s1 + $0x68] sm:$0xff]
    %v43 = vld [vmem:[%s1 + $0x70] sm:$0xff]
    %v44 = vld [vmem:[%s1 + $0x78] sm:$0xff]
    %v45 = vld [vmem:[%s0] sm:$0xff]
    %v46 = vld [vmem:[%s0 + $0x8] sm:$0xff]
    %vm47 = vcmask 64512
    %v49 = vsel %vm47, %v29, 0
    %v52 = vsel %vm47, %v30, 0
    %v55 = vsel %vm47, %v31, 0
    %v58 = vsel %vm47, %v32, 0
    %v61 = vsel %vm47, %v33, 0
    %v64 = vsel %vm47, %v34, 0
    %v67 = vsel %vm47, %v35, 0
    %v70 = vsel %vm47, %v36, 0
    %v73 = vsel %vm47, %v37, 0
    %v76 = vsel %vm47, %v38, 0
    %v79 = vsel %vm47, %v39, 0
    %v82 = vsel %vm47, %v40, 0
    %v85 = vsel %vm47, %v41, 0
    %v88 = vsel %vm47, %v42, 0
    %v91 = vsel %vm47, %v43, 0
    %v94 = vsel %vm47, %v44, 0
    %96 = vmatpush.msra.mxu0 0.0
    %97 = vmatpush.msra.mxu0 0.0
    %98 = vmatpush.msra.mxu0 0.0
    %99 = vmatpush.msra.mxu0 0.0
    %100 = vmatpush.msra.mxu0 0.0
    %101 = vmatpush.msra.mxu0 0.0
    %102 = vmatpush.msra.mxu0 0.0
    %103 = vmatpush.msra.mxu0 0.0
    %104 = vmatpush.msra.mxu0 0.0
    %105 = vmatpush.msra.mxu0 0.0
    %106 = vmatpush.msra.mxu0 0.0
    %107 = vmatpush.msra.mxu0 0.0
    %108 = vmatpush.msra.mxu0 0.0
    %109 = vmatpush.msra.mxu0 0.0
    %110 = vmatpush.msra.mxu0 0.0
    %111 = vmatpush.msra.mxu0 %v45
    %112 = vmatmul.f32.gmra.mxu0 %v49
    %v113 = vpop.f32.mrf.mxu0
    %v114 = vadd.f32 0.0, %v113
    %115 = vmatmul.f32.gmra.mxu0 %v52
    %v116 = vpop.f32.mrf.mxu0
    %v117 = vadd.f32 0.0, %v116
    %118 = vmatmul.f32.gmra.mxu0 %v55
    %v119 = vpop.f32.mrf.mxu0
    %v120 = vadd.f32 0.0, %v119
    %121 = vmatmul.f32.gmra.mxu0 %v58
    %v122 = vpop.f32.mrf.mxu0
    %v123 = vadd.f32 0.0, %v122
    %124 = vmatmul.f32.gmra.mxu0 %v61
    %v125 = vpop.f32.mrf.mxu0
    %v126 = vadd.f32 0.0, %v125
    %127 = vmatmul.f32.gmra.mxu0 %v64
    %v128 = vpop.f32.mrf.mxu0
    %v129 = vadd.f32 0.0, %v128
    %130 = vmatmul.f32.gmra.mxu0 %v67
    %v131 = vpop.f32.mrf.mxu0
    %v132 = vadd.f32 0.0, %v131
    %133 = vmatmul.f32.gmra.mxu0 %v70
    %v134 = vpop.f32.mrf.mxu0
    %v135 = vadd.f32 0.0, %v134
    %136 = vmatmul.f32.gmra.mxu0 %v73
    %v137 = vpop.f32.mrf.mxu0
    %v138 = vadd.f32 0.0, %v137
    %139 = vmatmul.f32.gmra.mxu0 %v76
    %v140 = vpop.f32.mrf.mxu0
    %v141 = vadd.f32 0.0, %v140
    %142 = vmatmul.f32.gmra.mxu0 %v79
    %v143 = vpop.f32.mrf.mxu0
    %v144 = vadd.f32 0.0, %v143
    %145 = vmatmul.f32.gmra.mxu0 %v82
    %v146 = vpop.f32.mrf.mxu0
    %v147 = vadd.f32 0.0, %v146
    %148 = vmatmul.f32.gmra.mxu0 %v85
    %v149 = vpop.f32.mrf.mxu0
    %v150 = vadd.f32 0.0, %v149
    %151 = vmatmul.f32.gmra.mxu0 %v88
    %v152 = vpop.f32.mrf.mxu0
    %v153 = vadd.f32 0.0, %v152
    %154 = vmatmul.f32.gmra.mxu0 %v91
    %v155 = vpop.f32.mrf.mxu0
    %v156 = vadd.f32 0.0, %v155
    %157 = vmatmul.f32.gmra.mxu0 %v94
    %v158 = vpop.f32.mrf.mxu0
    %v159 = vadd.f32 0.0, %v158
    %160 = vdwg.mxu0
    %161 = vmatpush.msra.mxu0 0.0
    %162 = vmatpush.msra.mxu0 0.0
    %163 = vmatpush.msra.mxu0 0.0
    %164 = vmatpush.msra.mxu0 0.0
    %165 = vmatpush.msra.mxu0 0.0
    %166 = vmatpush.msra.mxu0 0.0
    %167 = vmatpush.msra.mxu0 0.0
    %168 = vmatpush.msra.mxu0 0.0
    %169 = vmatpush.msra.mxu0 0.0
    %170 = vmatpush.msra.mxu0 0.0
    %171 = vmatpush.msra.mxu0 0.0
    %172 = vmatpush.msra.mxu0 0.0
    %173 = vmatpush.msra.mxu0 0.0
    %174 = vmatpush.msra.mxu0 0.0
    %175 = vmatpush.msra.mxu0 0.0
    %176 = vmatpush.msra.mxu0 %v46
    %177 = vmatmul.f32.gmra.mxu0 %v49
    %v178 = vpop.f32.mrf.mxu0
    %v179 = vadd.f32 0.0, %v178
    %180 = vmatmul.f32.gmra.mxu0 %v52
    %v181 = vpop.f32.mrf.mxu0
    %v182 = vadd.f32 0.0, %v181
    %183 = vmatmul.f32.gmra.mxu0 %v55
    %v184 = vpop.f32.mrf.mxu0
    %v185 = vadd.f32 0.0, %v184
    %186 = vmatmul.f32.gmra.mxu0 %v58
    %v187 = vpop.f32.mrf.mxu0
    %v188 = vadd.f32 0.0, %v187
    %189 = vmatmul.f32.gmra.mxu0 %v61
    %v190 = vpop.f32.mrf.mxu0
    %v191 = vadd.f32 0.0, %v190
    %192 = vmatmul.f32.gmra.mxu0 %v64
    %v193 = vpop.f32.mrf.mxu0
    %v194 = vadd.f32 0.0, %v193
    %195 = vmatmul.f32.gmra.mxu0 %v67
    %v196 = vpop.f32.mrf.mxu0
    %v197 = vadd.f32 0.0, %v196
    %198 = vmatmul.f32.gmra.mxu0 %v70
    %v199 = vpop.f32.mrf.mxu0
    %v200 = vadd.f32 0.0, %v199
    %201 = vmatmul.f32.gmra.mxu0 %v73
    %v202 = vpop.f32.mrf.mxu0
    %v203 = vadd.f32 0.0, %v202
    %204 = vmatmul.f32.gmra.mxu0 %v76
    %v205 = vpop.f32.mrf.mxu0
    %v206 = vadd.f32 0.0, %v205
    %207 = vmatmul.f32.gmra.mxu0 %v79
    %v208 = vpop.f32.mrf.mxu0
    %v209 = vadd.f32 0.0, %v208
    %210 = vmatmul.f32.gmra.mxu0 %v82
    %v211 = vpop.f32.mrf.mxu0
    %v212 = vadd.f32 0.0, %v211
    %213 = vmatmul.f32.gmra.mxu0 %v85
    %v214 = vpop.f32.mrf.mxu0
    %v215 = vadd.f32 0.0, %v214
    %216 = vmatmul.f32.gmra.mxu0 %v88
    %v217 = vpop.f32.mrf.mxu0
    %v218 = vadd.f32 0.0, %v217
    %219 = vmatmul.f32.gmra.mxu0 %v91
    %v220 = vpop.f32.mrf.mxu0
    %v221 = vadd.f32 0.0, %v220
    %222 = vmatmul.f32.gmra.mxu0 %v94
    %v223 = vpop.f32.mrf.mxu0
    %v224 = vadd.f32 0.0, %v223
    %225 = vdwg.mxu0
    %v226 = vmax.f32 %v114, 0.0
    %v227 = vmax.f32 %v179, 0.0
    %v228 = vmax.f32 %v117, 0.0
    %v229 = vmax.f32 %v182, 0.0
    %v230 = vmax.f32 %v120, 0.0
    %v231 = vmax.f32 %v185, 0.0
    %v232 = vmax.f32 %v123, 0.0
    %v233 = vmax.f32 %v188, 0.0
    %v234 = vmax.f32 %v126, 0.0
    %v235 = vmax.f32 %v191, 0.0
    %v236 = vmax.f32 %v129, 0.0
    %v237 = vmax.f32 %v194, 0.0
    %v238 = vmax.f32 %v132, 0.0
    %v239 = vmax.f32 %v197, 0.0
    %v240 = vmax.f32 %v135, 0.0
    %v241 = vmax.f32 %v200, 0.0
    %v242 = vmax.f32 %v138, 0.0
    %v243 = vmax.f32 %v203, 0.0
    %v244 = vmax.f32 %v141, 0.0
    %v245 = vmax.f32 %v206, 0.0
    %v246 = vmax.f32 %v144, 0.0
    %v247 = vmax.f32 %v209, 0.0
    %v248 = vmax.f32 %v147, 0.0
    %v249 = vmax.f32 %v212, 0.0
    %v250 = vmax.f32 %v150, 0.0
    %v251 = vmax.f32 %v215, 0.0
    %v252 = vmax.f32 %v153, 0.0
    %v253 = vmax.f32 %v218, 0.0
    %v254 = vmax.f32 %v156, 0.0
    %v255 = vmax.f32 %v221, 0.0
    %v256 = vmax.f32 %v159, 0.0
    %v257 = vmax.f32 %v224, 0.0
    %v258 = vadd.f32 %v226, %v228
    %v259 = vadd.f32 %v258, %v230
    %v260 = vadd.f32 %v259, %v232
    %v261 = vadd.f32 %v260, %v234
    %v262 = vadd.f32 %v261, %v236
    %v263 = vadd.f32 %v262, %v238
    %v264 = vadd.f32 %v263, %v240
    %v265 = vadd.f32 %v264, %v242
    %v266 = vadd.f32 %v265, %v244
    %v267 = vadd.f32 %v266, %v246
    %v268 = vadd.f32 %v267, %v248
    %v269 = vadd.f32 %v268, %v250
    %v270 = vadd.f32 %v269, %v252
    %v271 = vadd.f32 %v270, %v254
    %v272 = vadd.f32 %v271, %v256
    %v273 = vrot.slane %v272, 4
    %v274 = vadd.f32 %v272, %v273
    %v275 = vrot.slane %v274, 2
    %v276 = vadd.f32 %v274, %v275
    %v277 = vrot.slane %v276, 1
    %v278 = vadd.f32 %v276, %v277
    %v279 = vadd.f32 %v227, %v229
    %v280 = vadd.f32 %v279, %v231
    %v281 = vadd.f32 %v280, %v233
    %v282 = vadd.f32 %v281, %v235
    %v283 = vadd.f32 %v282, %v237
    %v284 = vadd.f32 %v283, %v239
    %v285 = vadd.f32 %v284, %v241
    %v286 = vadd.f32 %v285, %v243
    %v287 = vadd.f32 %v286, %v245
    %v288 = vadd.f32 %v287, %v247
    %v289 = vadd.f32 %v288, %v249
    %v290 = vadd.f32 %v289, %v251
    %v291 = vadd.f32 %v290, %v253
    %v292 = vadd.f32 %v291, %v255
    %v293 = vadd.f32 %v292, %v257
    %v294 = vrot.slane %v293, 4
    %v295 = vadd.f32 %v293, %v294
    %v296 = vrot.slane %v295, 2
    %v297 = vadd.f32 %v295, %v296
    %v298 = vrot.slane %v297, 1
    %v299 = vadd.f32 %v297, %v298
    %v300 = vmul.f32 %v278, 0.0078125
    %v301 = vmul.f32 %v299, 0.0078125
    %v302 = vmul.f32 %v226, %v226
    %v303 = vmul.f32 %v227, %v227
    %v304 = vmul.f32 %v228, %v228
    %v305 = vmul.f32 %v229, %v229
    %v306 = vmul.f32 %v230, %v230
    %v307 = vmul.f32 %v231, %v231
    %v308 = vmul.f32 %v232, %v232
    %v309 = vmul.f32 %v233, %v233
    %v310 = vmul.f32 %v234, %v234
    %v311 = vmul.f32 %v235, %v235
    %v312 = vmul.f32 %v236, %v236
    %v313 = vmul.f32 %v237, %v237
    %v314 = vmul.f32 %v238, %v238
    %v315 = vmul.f32 %v239, %v239
    %v316 = vmul.f32 %v240, %v240
    %v317 = vmul.f32 %v241, %v241
    %v318 = vmul.f32 %v242, %v242
    %v319 = vmul.f32 %v243, %v243
    %v320 = vmul.f32 %v244, %v244
    %v321 = vmul.f32 %v245, %v245
    %v322 = vmul.f32 %v246, %v246
    %v323 = vmul.f32 %v247, %v247
    %v324 = vmul.f32 %v248, %v248
    %v325 = vmul.f32 %v249, %v249
    %v326 = vmul.f32 %v250, %v250
    %v327 = vmul.f32 %v251, %v251
    %v328 = vmul.f32 %v252, %v252
    %v329 = vmul.f32 %v253, %v253
    %v330 = vmul.f32 %v254, %v254
    %v331 = vmul.f32 %v255, %v255
    %v332 = vmul.f32 %v256, %v256
    %v333 = vmul.f32 %v257, %v257
    %v334 = vadd.f32 %v302, %v304
    %v335 = vadd.f32 %v334, %v306
    %v336 = vadd.f32 %v335, %v308
    %v337 = vadd.f32 %v336, %v310
    %v338 = vadd.f32 %v337, %v312
    %v339 = vadd.f32 %v338, %v314
    %v340 = vadd.f32 %v339, %v316
    %v341 = vadd.f32 %v340, %v318
    %v342 = vadd.f32 %v341, %v320
    %v343 = vadd.f32 %v342, %v322
    %v344 = vadd.f32 %v343, %v324
    %v345 = vadd.f32 %v344, %v326
    %v346 = vadd.f32 %v345, %v328
    %v347 = vadd.f32 %v346, %v330
    %v348 = vadd.f32 %v347, %v332
    %v349 = vrot.slane %v348, 4
    %v350 = vadd.f32 %v348, %v349
    %v351 = vrot.slane %v350, 2
    %v352 = vadd.f32 %v350, %v351
    %v353 = vrot.slane %v352, 1
    %v354 = vadd.f32 %v352, %v353
    %v355 = vadd.f32 %v303, %v305
    %v356 = vadd.f32 %v355, %v307
    %v357 = vadd.f32 %v356, %v309
    %v358 = vadd.f32 %v357, %v311
    %v359 = vadd.f32 %v358, %v313
    %v360 = vadd.f32 %v359, %v315
    %v361 = vadd.f32 %v360, %v317
    %v362 = vadd.f32 %v361, %v319
    %v363 = vadd.f32 %v362, %v321
    %v364 = vadd.f32 %v363, %v323
    %v365 = vadd.f32 %v364, %v325
    %v366 = vadd.f32 %v365, %v327
    %v367 = vadd.f32 %v366, %v329
    %v368 = vadd.f32 %v367, %v331
    %v369 = vadd.f32 %v368, %v333
    %v370 = vrot.slane %v369, 4
    %v371 = vadd.f32 %v369, %v370
    %v372 = vrot.slane %v371, 2
    %v373 = vadd.f32 %v371, %v372
    %v374 = vrot.slane %v373, 1
    %v375 = vadd.f32 %v373, %v374
    %v376 = vmul.f32 %v354, 0.0078125
    %v377 = vmul.f32 %v375, 0.0078125
    %v378 = vmul.f32 %v300, %v300
    %v379 = vmul.f32 %v301, %v301
    %v380 = vsub.f32 %v376, %v378
    %v381 = vsub.f32 %v377, %v379
    %v382 = vadd.f32 %v380, 1e-05
    %v383 = vadd.f32 %v381, 1e-05
    %v384 = vrsqrt.pop %v382
    %v385 = vmul.f32 %v384, %v382
    %v386 = vmul.f32 %v385, %v384
    %v387 = vmul.f32 0.5, %v386
    %v388 = vsub.f32 1.5, %v387
    %v389 = vmul.f32 %v384, %v388
    %vm390 = vweird.f32 %v382
    %vm391 = vweird.f32 %v384
    %vm392 = vmor %vm390, %vm391
    %v393 = vsel %vm392, %v384, %v389
    %v394 = vrsqrt.pop %v383
    %v395 = vmul.f32 %v394, %v383
    %v396 = vmul.f32 %v395, %v394
    %v397 = vmul.f32 0.5, %v396
    %v398 = vsub.f32 1.5, %v397
    %v399 = vmul.f32 %v394, %v398
    %vm400 = vweird.f32 %v383
    %vm401 = vweird.f32 %v394
    %vm402 = vmor %vm400, %vm401
    %v403 = vsel %vm402, %v394, %v399
    %v404 = vmul.f32 %v300, %v393
    %v405 = vmul.f32 %v301, %v403
    %v406 = vld [vmem:[%s2] sm:$0xff]
    %v407 = vld [vmem:[%s2 + $0x8] sm:$0xff]
    %v408 = vld [vmem:[%s2 + $0x10] sm:$0xff]
    %v409 = vld [vmem:[%s2 + $0x18] sm:$0xff]
    %v410 = vld [vmem:[%s2 + $0x20] sm:$0xff]
    %v411 = vld [vmem:[%s2 + $0x28] sm:$0xff]
    %v412 = vld [vmem:[%s2 + $0x30] sm:$0xff]
    %v413 = vld [vmem:[%s2 + $0x38] sm:$0xff]
    %414 = vmatpush.msra.mxu0 %v256
    %415 = vmatpush.msra.mxu0 %v254
    %416 = vmatpush.msra.mxu0 %v252
    %417 = vmatpush.msra.mxu0 %v250
    %418 = vmatpush.msra.mxu0 %v248
    %419 = vmatpush.msra.mxu0 %v246
    %420 = vmatpush.msra.mxu0 %v244
    %421 = vmatpush.msra.mxu0 %v242
    %422 = vmatpush.msra.mxu0 %v240
    %423 = vmatpush.msra.mxu0 %v238
    %424 = vmatpush.msra.mxu0 %v236
    %425 = vmatpush.msra.mxu0 %v234
    %426 = vmatpush.msra.mxu0 %v232
    %427 = vmatpush.msra.mxu0 %v230
    %428 = vmatpush.msra.mxu0 %v228
    %429 = vmatpush.msra.mxu0 %v226
    %430 = vmatmul.f32.gmra.mxu0 %v406
    %v431 = vpop.f32.mrf.mxu0
    %v432 = vadd.f32 0.0, %v431
    %433 = vmatmul.f32.gmra.mxu0 %v407
    %v434 = vpop.f32.mrf.mxu0
    %v435 = vadd.f32 0.0, %v434
    %436 = vmatmul.f32.gmra.mxu0 %v408
    %v437 = vpop.f32.mrf.mxu0
    %v438 = vadd.f32 0.0, %v437
    %439 = vmatmul.f32.gmra.mxu0 %v409
    %v440 = vpop.f32.mrf.mxu0
    %v441 = vadd.f32 0.0, %v440
    %442 = vmatmul.f32.gmra.mxu0 %v410
    %v443 = vpop.f32.mrf.mxu0
    %v444 = vadd.f32 0.0, %v443
    %445 = vmatmul.f32.gmra.mxu0 %v411
    %v446 = vpop.f32.mrf.mxu0
    %v447 = vadd.f32 0.0, %v446
    %448 = vmatmul.f32.gmra.mxu0 %v412
    %v449 = vpop.f32.mrf.mxu0
    %v450 = vadd.f32 0.0, %v449
    %451 = vmatmul.f32.gmra.mxu0 %v413
    %v452 = vpop.f32.mrf.mxu0
    %v453 = vadd.f32 0.0, %v452
    %454 = vdwg.mxu0
    %455 = vmatpush.msra.mxu0 %v257
    %456 = vmatpush.msra.mxu0 %v255
    %457 = vmatpush.msra.mxu0 %v253
    %458 = vmatpush.msra.mxu0 %v251
    %459 = vmatpush.msra.mxu0 %v249
    %460 = vmatpush.msra.mxu0 %v247
    %461 = vmatpush.msra.mxu0 %v245
    %462 = vmatpush.msra.mxu0 %v243
    %463 = vmatpush.msra.mxu0 %v241
    %464 = vmatpush.msra.mxu0 %v239
    %465 = vmatpush.msra.mxu0 %v237
    %466 = vmatpush.msra.mxu0 %v235
    %467 = vmatpush.msra.mxu0 %v233
    %468 = vmatpush.msra.mxu0 %v231
    %469 = vmatpush.msra.mxu0 %v229
    %470 = vmatpush.msra.mxu0 %v227
    %471 = vmatmul.f32.gmra.mxu0 %v406
    %v472 = vpop.f32.mrf.mxu0
    %v473 = vadd.f32 0.0, %v472
    %474 = vmatmul.f32.gmra.mxu0 %v407
    %v475 = vpop.f32.mrf.mxu0
    %v476 = vadd.f32 0.0, %v475
    %477 = vmatmul.f32.gmra.mxu0 %v408
    %v478 = vpop.f32.mrf.mxu0
    %v479 = vadd.f32 0.0, %v478
    %480 = vmatmul.f32.gmra.mxu0 %v409
    %v481 = vpop.f32.mrf.mxu0
    %v482 = vadd.f32 0.0, %v481
    %483 = vmatmul.f32.gmra.mxu0 %v410
    %v484 = vpop.f32.mrf.mxu0
    %v485 = vadd.f32 0.0, %v484
    %486 = vmatmul.f32.gmra.mxu0 %v411
    %v487 = vpop.f32.mrf.mxu0
    %v488 = vadd.f32 0.0, %v487
    %489 = vmatmul.f32.gmra.mxu0 %v412
    %v490 = vpop.f32.mrf.mxu0
    %v491 = vadd.f32 0.0, %v490
    %492 = vmatmul.f32.gmra.mxu0 %v413
    %v493 = vpop.f32.mrf.mxu0
    %v494 = vadd.f32 0.0, %v493
    %495 = vdwg.mxu0
    %v496 = vmul.f32 %v432, %v393
    %v497 = vmul.f32 %v473, %v403
    %v498 = vmul.f32 %v435, %v393
    %v499 = vmul.f32 %v476, %v403
    %v500 = vmul.f32 %v438, %v393
    %v501 = vmul.f32 %v479, %v403
    %v502 = vmul.f32 %v441, %v393
    %v503 = vmul.f32 %v482, %v403
    %v504 = vmul.f32 %v444, %v393
    %v505 = vmul.f32 %v485, %v403
    %v506 = vmul.f32 %v447, %v393
    %v507 = vmul.f32 %v488, %v403
    %v508 = vmul.f32 %v450, %v393
    %v509 = vmul.f32 %v491, %v403
    %v510 = vmul.f32 %v453, %v393
    %v511 = vmul.f32 %v494, %v403
    %v512 = vld [vmem:[%s4] sm:$0xff]
    %v513 = vld [vmem:[%s4 + $0x8] sm:$0xff]
    %v514 = vld [vmem:[%s4 + $0x10] sm:$0xff]
    %v515 = vld [vmem:[%s4 + $0x18] sm:$0xff]
    %v516 = vld [vmem:[%s4 + $0x20] sm:$0xff]
    %v517 = vld [vmem:[%s4 + $0x28] sm:$0xff]
    %v518 = vld [vmem:[%s4 + $0x30] sm:$0xff]
    %v519 = vld [vmem:[%s4 + $0x38] sm:$0xff]
    %521 = vset.pattern.permute.xlu0 0
    %522 = vperm.xlu0 %521, %v512
    %v523 = vpop.permute.xlu0 %522
    %526 = vset.pattern.permute.xlu0 0
    %527 = vperm.xlu0 %526, %v513
    %v528 = vpop.permute.xlu0 %527
    %531 = vset.pattern.permute.xlu0 0
    %532 = vperm.xlu0 %531, %v514
    %v533 = vpop.permute.xlu0 %532
    %536 = vset.pattern.permute.xlu0 0
    %537 = vperm.xlu0 %536, %v515
    %v538 = vpop.permute.xlu0 %537
    %541 = vset.pattern.permute.xlu0 0
    %542 = vperm.xlu0 %541, %v516
    %v543 = vpop.permute.xlu0 %542
    %546 = vset.pattern.permute.xlu0 0
    %547 = vperm.xlu0 %546, %v517
    %v548 = vpop.permute.xlu0 %547
    %551 = vset.pattern.permute.xlu0 0
    %552 = vperm.xlu0 %551, %v518
    %v553 = vpop.permute.xlu0 %552
    %556 = vset.pattern.permute.xlu0 0
    %557 = vperm.xlu0 %556, %v519
    %v558 = vpop.permute.xlu0 %557
    %v560 = vmul.f32 %v523, %v404
    %v561 = vmul.f32 %v523, %v405
    %v562 = vmul.f32 %v528, %v404
    %v563 = vmul.f32 %v528, %v405
    %v564 = vmul.f32 %v533, %v404
    %v565 = vmul.f32 %v533, %v405
    %v566 = vmul.f32 %v538, %v404
    %v567 = vmul.f32 %v538, %v405
    %v568 = vmul.f32 %v543, %v404
    %v569 = vmul.f32 %v543, %v405
    %v570 = vmul.f32 %v548, %v404
    %v571 = vmul.f32 %v548, %v405
    %v572 = vmul.f32 %v553, %v404
    %v573 = vmul.f32 %v553, %v405
    %v574 = vmul.f32 %v558, %v404
    %v575 = vmul.f32 %v558, %v405
    %v576 = vsub.f32 %v496, %v560
    %v577 = vsub.f32 %v497, %v561
    %v578 = vsub.f32 %v498, %v562
    %v579 = vsub.f32 %v499, %v563
    %v580 = vsub.f32 %v500, %v564
    %v581 = vsub.f32 %v501, %v565
    %v582 = vsub.f32 %v502, %v566
    %v583 = vsub.f32 %v503, %v567
    %v584 = vsub.f32 %v504, %v568
    %v585 = vsub.f32 %v505, %v569
    %v586 = vsub.f32 %v506, %v570
    %v587 = vsub.f32 %v507, %v571
    %v588 = vsub.f32 %v508, %v572
    %v589 = vsub.f32 %v509, %v573
    %v590 = vsub.f32 %v510, %v574
    %v591 = vsub.f32 %v511, %v575
    %v592 = vld [vmem:[%s3] sm:$0xff]
    %v593 = vld [vmem:[%s3 + $0x8] sm:$0xff]
    %v594 = vld [vmem:[%s3 + $0x10] sm:$0xff]
    %v595 = vld [vmem:[%s3 + $0x18] sm:$0xff]
    %v596 = vld [vmem:[%s3 + $0x20] sm:$0xff]
    %v597 = vld [vmem:[%s3 + $0x28] sm:$0xff]
    %v598 = vld [vmem:[%s3 + $0x30] sm:$0xff]
    %v599 = vld [vmem:[%s3 + $0x38] sm:$0xff]
    %601 = vset.pattern.permute.xlu0 0
    %602 = vperm.xlu0 %601, %v592
    %v603 = vpop.permute.xlu0 %602
    %606 = vset.pattern.permute.xlu0 0
    %607 = vperm.xlu0 %606, %v593
    %v608 = vpop.permute.xlu0 %607
    %611 = vset.pattern.permute.xlu0 0
    %612 = vperm.xlu0 %611, %v594
    %v613 = vpop.permute.xlu0 %612
    %616 = vset.pattern.permute.xlu0 0
    %617 = vperm.xlu0 %616, %v595
    %v618 = vpop.permute.xlu0 %617
    %621 = vset.pattern.permute.xlu0 0
    %622 = vperm.xlu0 %621, %v596
    %v623 = vpop.permute.xlu0 %622
    %626 = vset.pattern.permute.xlu0 0
    %627 = vperm.xlu0 %626, %v597
    %v628 = vpop.permute.xlu0 %627
    %631 = vset.pattern.permute.xlu0 0
    %632 = vperm.xlu0 %631, %v598
    %v633 = vpop.permute.xlu0 %632
    %636 = vset.pattern.permute.xlu0 0
    %637 = vperm.xlu0 %636, %v599
    %v638 = vpop.permute.xlu0 %637
    %v640 = vadd.f32 %v576, %v603
    %v641 = vadd.f32 %v577, %v603
    %v642 = vadd.f32 %v578, %v608
    %v643 = vadd.f32 %v579, %v608
    %v644 = vadd.f32 %v580, %v613
    %v645 = vadd.f32 %v581, %v613
    %v646 = vadd.f32 %v582, %v618
    %v647 = vadd.f32 %v583, %v618
    %v648 = vadd.f32 %v584, %v623
    %v649 = vadd.f32 %v585, %v623
    %v650 = vadd.f32 %v586, %v628
    %v651 = vadd.f32 %v587, %v628
    %v652 = vadd.f32 %v588, %v633
    %v653 = vadd.f32 %v589, %v633
    %v654 = vadd.f32 %v590, %v638
    %v655 = vadd.f32 %v591, %v638
    %v656 = vmax.f32 %v640, 0.0
    %v657 = vmax.f32 %v641, 0.0
    %v658 = vmax.f32 %v642, 0.0
    %v659 = vmax.f32 %v643, 0.0
    %v660 = vmax.f32 %v644, 0.0
    %v661 = vmax.f32 %v645, 0.0
    %v662 = vmax.f32 %v646, 0.0
    %v663 = vmax.f32 %v647, 0.0
    %v664 = vmax.f32 %v648, 0.0
    %v665 = vmax.f32 %v649, 0.0
    %v666 = vmax.f32 %v650, 0.0
    %v667 = vmax.f32 %v651, 0.0
    %v668 = vmax.f32 %v652, 0.0
    %v669 = vmax.f32 %v653, 0.0
    %v670 = vmax.f32 %v654, 0.0
    %v671 = vmax.f32 %v655, 0.0
    %v672 = vld [vmem:[%s5] sm:$0xff]
    %v673 = vld [vmem:[%s5 + $0x8] sm:$0xff]
    %v674 = vld [vmem:[%s5 + $0x10] sm:$0xff]
    %v675 = vld [vmem:[%s5 + $0x18] sm:$0xff]
    %v676 = vld [vmem:[%s5 + $0x20] sm:$0xff]
    %v677 = vld [vmem:[%s5 + $0x28] sm:$0xff]
    %v678 = vld [vmem:[%s5 + $0x30] sm:$0xff]
    %v679 = vld [vmem:[%s5 + $0x38] sm:$0xff]
    %681 = vset.pattern.permute.xlu0 0
    %682 = vperm.xlu0 %681, %v672
    %v683 = vpop.permute.xlu0 %682
    %686 = vset.pattern.permute.xlu0 0
    %687 = vperm.xlu0 %686, %v673
    %v688 = vpop.permute.xlu0 %687
    %691 = vset.pattern.permute.xlu0 0
    %692 = vperm.xlu0 %691, %v674
    %v693 = vpop.permute.xlu0 %692
    %696 = vset.pattern.permute.xlu0 0
    %697 = vperm.xlu0 %696, %v675
    %v698 = vpop.permute.xlu0 %697
    %701 = vset.pattern.permute.xlu0 0
    %702 = vperm.xlu0 %701, %v676
    %v703 = vpop.permute.xlu0 %702
    %706 = vset.pattern.permute.xlu0 0
    %707 = vperm.xlu0 %706, %v677
    %v708 = vpop.permute.xlu0 %707
    %711 = vset.pattern.permute.xlu0 0
    %712 = vperm.xlu0 %711, %v678
    %v713 = vpop.permute.xlu0 %712
    %716 = vset.pattern.permute.xlu0 0
    %717 = vperm.xlu0 %716, %v679
    %v718 = vpop.permute.xlu0 %717
    %v720 = vmul.f32 %v656, %v683
    %v721 = vmul.f32 %v657, %v683
    %v722 = vmul.f32 %v658, %v688
    %v723 = vmul.f32 %v659, %v688
    %v724 = vmul.f32 %v660, %v693
    %v725 = vmul.f32 %v661, %v693
    %v726 = vmul.f32 %v662, %v698
    %v727 = vmul.f32 %v663, %v698
    %v728 = vmul.f32 %v664, %v703
    %v729 = vmul.f32 %v665, %v703
    %v730 = vmul.f32 %v666, %v708
    %v731 = vmul.f32 %v667, %v708
    %v732 = vmul.f32 %v668, %v713
    %v733 = vmul.f32 %v669, %v713
    %v734 = vmul.f32 %v670, %v718
    %v735 = vmul.f32 %v671, %v718
    %v736 = vadd.f32 %v720, %v722
    %v737 = vadd.f32 %v736, %v724
    %v738 = vadd.f32 %v737, %v726
    %v739 = vadd.f32 %v738, %v728
    %v740 = vadd.f32 %v739, %v730
    %v741 = vadd.f32 %v740, %v732
    %v742 = vadd.f32 %v741, %v734
    %v743 = vrot.slane %v742, 4
    %v744 = vadd.f32 %v742, %v743
    %v745 = vrot.slane %v744, 2
    %v746 = vadd.f32 %v744, %v745
    %v747 = vrot.slane %v746, 1
    %v748 = vadd.f32 %v746, %v747
    %v749 = vadd.f32 %v721, %v723
    %v750 = vadd.f32 %v749, %v725
    %v751 = vadd.f32 %v750, %v727
    %v752 = vadd.f32 %v751, %v729
    %v753 = vadd.f32 %v752, %v731
    %v754 = vadd.f32 %v753, %v733
    %v755 = vadd.f32 %v754, %v735
    %v756 = vrot.slane %v755, 4
    %v757 = vadd.f32 %v755, %v756
    %v758 = vrot.slane %v757, 2
    %v759 = vadd.f32 %v757, %v758
    %v760 = vrot.slane %v759, 1
    %v761 = vadd.f32 %v759, %v760
    %v762 = vld [vmem:[#allocation2] sm:$0x1]
    %764 = vset.pattern.permute.xlu0 0
    %765 = vperm.xlu0 %764, %v762
    %v766 = vpop.permute.xlu0 %765
    %v768 = vperm.slane %v766, 0
    %v769 = vadd.f32 %v748, %v768
    %v770 = vadd.f32 %v761, %v768
    %v771 = vxor.u32 %v769, 2147483648
    %v772 = vxor.u32 %v770, 2147483648
    %v773 = vmul.f32 %v771, 1.442695
    %v774 = vpow.pop %v773
    %v775 = vmul.f32 %v772, 1.442695
    %v776 = vpow.pop %v775
    %v777 = vadd.f32 %v774, 1.0
    %v778 = vadd.f32 %v776, 1.0
    %v779 = vrcp.pop %v777
    %v780 = vmul.f32 %v777, %v779
    %v781 = vsub.f32 1.0, %v780
    %v782 = vmul.f32 %v779, %v781
    %v783 = vadd.f32 %v779, %v782
    %vm784 = vweird.f32 %v777
    %vm785 = vweird.f32 %v779
    %vm786 = vmor %vm784, %vm785
    %v787 = vsel %vm786, %v779, %v783
    %v788 = vand.u32 2147483647, %v777
    %vm789 = vcmp.eq.f32.partialorder %v788, 8.507059e+37
    %v790 = vand.u32 %v777, 2147483648
    %v791 = vor.u32 1.1754944e-38, %v790
    %v792 = vsel %vm789, %v791, %v787
    %v793 = vmul.f32 1.0, %v792
    %v794 = vrcp.pop %v778
    %v795 = vmul.f32 %v778, %v794
    %v796 = vsub.f32 1.0, %v795
    %v797 = vmul.f32 %v794, %v796
    %v798 = vadd.f32 %v794, %v797
    %vm799 = vweird.f32 %v778
    %vm800 = vweird.f32 %v794
    %vm801 = vmor %vm799, %vm800
    %v802 = vsel %vm801, %v794, %v798
    %v803 = vand.u32 2147483647, %v778
    %vm804 = vcmp.eq.f32.partialorder %v803, 8.507059e+37
    %v805 = vand.u32 %v778, 2147483648
    %v806 = vor.u32 1.1754944e-38, %v805
    %v807 = vsel %vm804, %v806, %v802
    %v808 = vmul.f32 1.0, %v807
    %v811 = vrot.slane %v808, 7
    %vm812 = vcmask 1040384
    %v813 = vsel %vm812, %v793, %v811
    %v815 = vlaneseq
    %vm816 = vcmp.ge.s32.totalorder %v815, 0
    %vm817 = vcmp.lt.s32.totalorder %v815, 256
    %vm818 = vmand %vm816, %vm817
    %819 = vst.msk [vmem:[#allocation3] sm:$0x3] %vm818, %v813
    // Predicated region
    $region30: #{tpu_custom_call.1} parent=1 // pred_check
      _
    $region31: #{tpu_custom_call.1} parent=1 // pred_check_branch
      %821 = sbr.rel (0) target = $region33
    $region32: #{tpu_custom_call.1} parent=1 // pred_region
      %823 = vsyncadd [#allocation4], 0
      %s825 = sshll.u32 [#allocation3], 4
      %s826 = int_to_ptr.vmem [resolvable:$true] %s825
      %s827 = sshll.u32 %s7, 4
      %s828 = int_to_ptr.hbm [resolvable:$true] %s827
      %830 = dma.vmem_to_hbm [thread:$0]  %s826, 32, %s828, [#allocation4]
    $region33: #{tpu_custom_call.1} parent=1 // pred_fallthru
      _
    // Predicated region
    $region34: #{tpu_custom_call.1} parent=1 // pred_check
      _
    $region35: #{tpu_custom_call.1} parent=1 // pred_check_branch
      %832 = sbr.rel (0) target = $region37
    $region36: #{tpu_custom_call.1} parent=1 // pred_region
      %834 = dma.done [#allocation4], 32
    $region37: #{tpu_custom_call.1} parent=1 // pred_fallthru
      _
    %835 = vsyncpa [#allocation4], 1

</llo_original>
